<compile_context>
chip_gen: v6e
topology: v6e:2x2x1
jax: 0.10.0
libtpu: 0.0.40
codegen_flags: <defaults>
</compile_context>

<pallas_src>
import functools

import jax
import jax.numpy as jnp
from jax import lax
from jax.experimental import pallas as pl
from jax.experimental.pallas import tpu as pltpu

EPS = 1e-7

# Boxes per grid step: ~4 MiB per f32 input block (16 B of input per box per
# tensor).  Double-buffered working set stays well under v7x's 64 MiB VMEM.
_TARGET_BLOCK_BOXES = 256 * 1024


def _round_up(x, m):
    return (x + m - 1) // m * m


def _pick_tg(g_total, l_total, target_boxes):
    """Rows (boxes-per-G-group) per block; multiple of 8 or == g_total."""
    # TODO(synk): an L-tiled fallback would be needed for absurdly large H*W
    # with tiny G (block would not fit VMEM); not needed for realistic maps.
    if g_total <= 8 or g_total * l_total <= target_boxes:
        return g_total
    by_size = max(8, (target_boxes // max(l_total, 1)) // 8 * 8)
    # Keep a few grid steps alive so the DMA pipeline has work to overlap and
    # v7x can shard the G axis across its two TensorCores.
    min_steps = 4 if (g_total >= 32 and g_total * l_total >= 4 * target_boxes) else 2
    by_steps = max(8, (g_total // min_steps) // 8 * 8)
    return max(8, min(by_size, by_steps))


def _giou_kernel(pred_ref, tgt_ref, ious_ref, part_ref, *,
                 l, g_total, tg, mask_g):
    f32 = jnp.float32

    def plane(ref, c):
        # Static lane slice of the (tg, 4L) block; cast bf16 -> f32 in-register.
        return ref[:, c * l:(c + 1) * l].astype(f32)

    pred_l, pred_t = plane(pred_ref, 0), plane(pred_ref, 1)
    pred_r, pred_b = plane(pred_ref, 2), plane(pred_ref, 3)
    tgt_l, tgt_t = plane(tgt_ref, 0), plane(tgt_ref, 1)
    tgt_r, tgt_b = plane(tgt_ref, 2), plane(tgt_ref, 3)

    target_area = (tgt_l + tgt_r) * (tgt_t + tgt_b)
    pred_area = (pred_l + pred_r) * (pred_t + pred_b)

    w_i = jnp.minimum(pred_l, tgt_l) + jnp.minimum(pred_r, tgt_r)
    gw_i = jnp.maximum(pred_l, tgt_l) + jnp.maximum(pred_r, tgt_r)
    h_i = jnp.minimum(pred_b, tgt_b) + jnp.minimum(pred_t, tgt_t)
    gh_i = jnp.maximum(pred_b, tgt_b) + jnp.maximum(pred_t, tgt_t)

    ac_union = gw_i * gh_i + EPS
    area_i = w_i * h_i
    area_u = target_area + pred_area - area_i + EPS

    # ious output is compared elementwise at tight tolerance -> exact divide.
    ious = area_i / area_u
    ious_ref[...] = ious.astype(ious_ref.dtype)   # partial rows clipped by Pallas

    # Loss-only term: approx reciprocal (EUP slot) + one Newton step keeps the
    # VALU path short on v7x; ~1e-7 relative error, well inside tolerance.
    inv_ac = pl.reciprocal(ac_union, approx=True)
    inv_ac = inv_ac * (2.0 - ac_union * inv_ac)
    losses = 1.0 - (ious - (ac_union - area_u) * inv_ac)

    if mask_g:  # ragged G tail: zero garbage rows via select (no NaN*0).
        rows = pl.program_id(0) * tg + lax.broadcasted_iota(
            jnp.int32, losses.shape, 0)
        losses = jnp.where(rows < g_total, losses, 0.0)

    part_ref[...] = jnp.sum(losses).reshape(1, 1, 1)


def giou_loss(pred, target, weights=None, *, block_boxes=_TARGET_BLOCK_BOXES):
    """Pallas implementation of GIoULoss.forward (weights=None path).

    Returns (loss_mean, ious) with ious flattened in (n, b, h, w) order,
    matching the PyTorch permute(0,1,3,4,2).reshape(-1,4) convention.
    """
    if weights is not None:
        # TODO(synk): weights branch does data-dependent boolean filtering
        # (dynamic output shape) which has no clean Pallas/JAX equivalent.
        raise NotImplementedError("weights path not supported")

    pred = jnp.asarray(pred)
    target = jnp.asarray(target)
    if pred.ndim == 4:
        pred = pred[None]
    if target.ndim == 4:
        target = target[None]
    # Mem-bound kernel: keep bf16 inputs as bf16 (cast in-register); anything
    # else (or mismatched dtypes) computes in f32.
    if pred.dtype != target.dtype or pred.dtype not in (jnp.float32, jnp.bfloat16):
        pred = pred.astype(jnp.float32)
        target = target.astype(jnp.float32)

    n, b, c, h, w = pred.shape
    assert c == 4, "coordinate channel must be 4 (l,t,r,b)"
    g_total = n * b
    l_total = h * w

    # Free reshapes: coordinate dim folded into the lane axis.
    p = pred.reshape(g_total, 4 * l_total)
    t = target.reshape(g_total, 4 * l_total)

    tg = _pick_tg(g_total, l_total, block_boxes)
    n_g = pl.cdiv(g_total, tg)
    mask_g = (g_total % tg) != 0

    kernel = functools.partial(_giou_kernel, l=l_total, g_total=g_total,
                               tg=tg, mask_g=mask_g)

    # Real double-buffered working set: 2 inputs x 2 bufs + ious out x 2 bufs
    # (lane-padded), plus slack for the tiny partial output / internal scratch.
    in_block = tg * _round_up(4 * l_total, 128) * pred.dtype.itemsize
    out_block = tg * _round_up(l_total, 128) * 4
    ws = 2 * 2 * in_block + 2 * out_block + (1 << 16)
    vmem_limit = int(min(max(ws + (ws >> 2), 16 << 20), 96 << 20))

    ious2d, partials = pl.pallas_call(
        kernel,
        out_shape=(
            jax.ShapeDtypeStruct((g_total, l_total), jnp.float32),
            jax.ShapeDtypeStruct((n_g, 1, 1), jnp.float32),
        ),
        grid_spec=pltpu.PrefetchScalarGridSpec(
            num_scalar_prefetch=0,
            grid=(n_g,),
            in_specs=[
                pl.BlockSpec((tg, 4 * l_total), lambda gi: (gi, 0)),
                pl.BlockSpec((tg, 4 * l_total), lambda gi: (gi, 0)),
            ],
            out_specs=[
                pl.BlockSpec((tg, l_total), lambda gi: (gi, 0)),
                pl.BlockSpec((1, 1, 1), lambda gi: (gi, 0, 0)),
            ],
        ),
        compiler_params=pltpu.CompilerParams(
            # Every grid step writes disjoint output blocks (own ious rows and
            # own partial sum) => fully parallel; v7x shards across both TCs.
            dimension_semantics=("parallel",),
            vmem_limit_bytes=vmem_limit,
        ),
    )(p, t)

    loss_mean = jnp.sum(partials) / jnp.float32(g_total * l_total)
    ious = ious2d.reshape(-1)
    return loss_mean, ious


def _reference(pred, target):
    """Pure-JAX transcription of the PyTorch forward (weights=None)."""
    pred = jnp.asarray(pred, jnp.float32)
    target = jnp.asarray(target, jnp.float32)
    if pred.ndim == 4:
        pred = pred[None]
    if target.ndim == 4:
        target = target[None]
    p = jnp.transpose(pred, (0, 1, 3, 4, 2)).reshape(-1, 4)
    t = jnp.transpose(target, (0, 1, 3, 4, 2)).reshape(-1, 4)
    pl_, pt, pr, pb = p[:, 0], p[:, 1], p[:, 2], p[:, 3]
    tl, tt, tr, tb = t[:, 0], t[:, 1], t[:, 2], t[:, 3]
    target_area = (tl + tr) * (tt + tb)
    pred_area = (pl_ + pr) * (pt + pb)
    w_i = jnp.minimum(pl_, tl) + jnp.minimum(pr, tr)
    gw_i = jnp.maximum(pl_, tl) + jnp.maximum(pr, tr)
    h_i = jnp.minimum(pb, tb) + jnp.minimum(pt, tt)
    gh_i = jnp.maximum(pb, tb) + jnp.maximum(pt, tt)
    ac_union = gw_i * gh_i + EPS
    area_i = w_i * h_i
    area_u = target_area + pred_area - area_i + EPS
    ious = area_i / area_u
    gious = ious - (ac_union - area_u) / ac_union
    losses = 1.0 - gious
    return jnp.mean(losses), ious


def _check(shape, key, block_boxes=_TARGET_BLOCK_BOXES):
    k1, k2 = jax.random.split(key)
    pred = jax.random.uniform(k1, shape, jnp.float32, 0.1, 2.0)
    target = jax.random.uniform(k2, shape, jnp.float32, 0.1, 2.0)
    loss_mean, ious = giou_loss(pred, target, block_boxes=block_boxes)
    jax.block_until_ready((loss_mean, ious))
    ref_loss, ref_ious = _reference(pred, target)
    assert jnp.allclose(loss_mean, ref_loss, rtol=1e-5, atol=1e-5), (
        shape, float(loss_mean), float(ref_loss))
    assert jnp.allclose(ious, ref_ious, rtol=1e-5, atol=1e-5), shape


if __name__ == "__main__":
    keys = jax.random.split(jax.random.PRNGKey(0), 4)
    # (N, B, 4, H, W): l,t,r,b distance maps (positive offsets).
    _check((1, 2, 4, 8, 8), keys[0])                        # single block, tiny
    _check((2, 4, 4, 16, 16), keys[1])                      # single block, G == 8
    _check((1, 16, 4, 16, 16), keys[2], block_boxes=2048)   # 2 even G-blocks, lane-aligned L
    _check((1, 10, 4, 18, 20), keys[3], block_boxes=1024)   # ragged G tail, unaligned L
    print("KERNEL_OK")
</pallas_src>

<mosaic_0001>
module attributes {stable_mosaic.version = 11 : i64} {
  func.func @_giou_kernel(%arg0: i32, %arg1: memref<2x256xf32, #tpu.memory_space<vmem>>, %arg2: memref<2x256xf32, #tpu.memory_space<vmem>>, %arg3: memref<2x64xf32, #tpu.memory_space<vmem>>, %arg4: memref<1x1x1xf32, #tpu.memory_space<vmem>>) attributes {dimension_semantics = [#tpu.dimension_semantics<parallel>], iteration_bounds = array<i64: 1>, scalar_prefetch = 0 : i64, scratch_operands = 0 : i64, tpu.core_type = #tpu.core_type<tc>, window_params = [{transform_indices = @transform_0, window_bounds = array<i64: 2, 256>}, {transform_indices = @transform_1, window_bounds = array<i64: 2, 256>}, {transform_indices = @transform_2, window_bounds = array<i64: 2, 64>}, {transform_indices = @transform_3, window_bounds = array<i64: 1, 1, 1>}]} {
    %c0 = arith.constant 0 : index
    %c0_0 = arith.constant 0 : index
    %0 = vector.load %arg1[%c0, %c0_0] : memref<2x256xf32, #tpu.memory_space<vmem>>, vector<2x64xf32>
    %c0_1 = arith.constant 0 : index
    %c64 = arith.constant 64 : index
    %1 = vector.load %arg1[%c0_1, %c64] : memref<2x256xf32, #tpu.memory_space<vmem>>, vector<2x64xf32>
    %c0_2 = arith.constant 0 : index
    %c128 = arith.constant 128 : index
    %2 = vector.load %arg1[%c0_2, %c128] : memref<2x256xf32, #tpu.memory_space<vmem>>, vector<2x64xf32>
    %c0_3 = arith.constant 0 : index
    %c192 = arith.constant 192 : index
    %3 = vector.load %arg1[%c0_3, %c192] : memref<2x256xf32, #tpu.memory_space<vmem>>, vector<2x64xf32>
    %c0_4 = arith.constant 0 : index
    %c0_5 = arith.constant 0 : index
    %4 = vector.load %arg2[%c0_4, %c0_5] : memref<2x256xf32, #tpu.memory_space<vmem>>, vector<2x64xf32>
    %c0_6 = arith.constant 0 : index
    %c64_7 = arith.constant 64 : index
    %5 = vector.load %arg2[%c0_6, %c64_7] : memref<2x256xf32, #tpu.memory_space<vmem>>, vector<2x64xf32>
    %c0_8 = arith.constant 0 : index
    %c128_9 = arith.constant 128 : index
    %6 = vector.load %arg2[%c0_8, %c128_9] : memref<2x256xf32, #tpu.memory_space<vmem>>, vector<2x64xf32>
    %c0_10 = arith.constant 0 : index
    %c192_11 = arith.constant 192 : index
    %7 = vector.load %arg2[%c0_10, %c192_11] : memref<2x256xf32, #tpu.memory_space<vmem>>, vector<2x64xf32>
    %8 = arith.addf %4, %6 : vector<2x64xf32>
    %9 = arith.addf %5, %7 : vector<2x64xf32>
    %10 = arith.mulf %8, %9 : vector<2x64xf32>
    %11 = arith.addf %0, %2 : vector<2x64xf32>
    %12 = arith.addf %1, %3 : vector<2x64xf32>
    %13 = arith.mulf %11, %12 : vector<2x64xf32>
    %14 = arith.minimumf %0, %4 : vector<2x64xf32>
    %15 = arith.minimumf %2, %6 : vector<2x64xf32>
    %16 = arith.addf %14, %15 : vector<2x64xf32>
    %17 = arith.maximumf %0, %4 : vector<2x64xf32>
    %18 = arith.maximumf %2, %6 : vector<2x64xf32>
    %19 = arith.addf %17, %18 : vector<2x64xf32>
    %20 = arith.minimumf %3, %7 : vector<2x64xf32>
    %21 = arith.minimumf %1, %5 : vector<2x64xf32>
    %22 = arith.addf %20, %21 : vector<2x64xf32>
    %23 = arith.maximumf %3, %7 : vector<2x64xf32>
    %24 = arith.maximumf %1, %5 : vector<2x64xf32>
    %25 = arith.addf %23, %24 : vector<2x64xf32>
    %26 = arith.mulf %19, %25 : vector<2x64xf32>
    %cst = arith.constant 1.000000e-07 : f32
    %27 = vector.broadcast %cst : f32 to vector<2x64xf32>
    %28 = arith.addf %26, %27 : vector<2x64xf32>
    %29 = arith.mulf %16, %22 : vector<2x64xf32>
    %30 = arith.addf %10, %13 : vector<2x64xf32>
    %31 = arith.subf %30, %29 : vector<2x64xf32>
    %cst_12 = arith.constant 1.000000e-07 : f32
    %32 = vector.broadcast %cst_12 : f32 to vector<2x64xf32>
    %33 = arith.addf %31, %32 : vector<2x64xf32>
    %34 = arith.divf %29, %33 : vector<2x64xf32>
    %c0_13 = arith.constant 0 : index
    %c0_14 = arith.constant 0 : index
    %35 = vector.load %arg3[%c0_13, %c0_14] : memref<2x64xf32, #tpu.memory_space<vmem>>, vector<2x64xf32>
    tpu.vector_store %arg3[%c0_13, %c0_14], %34 {strides = array<i32>} : memref<2x64xf32, #tpu.memory_space<vmem>>, vector<2x64xf32>,
    %36 = tpu.reciprocal %28 {approx = true} : vector<2x64xf32> -> vector<2x64xf32>
    %37 = arith.mulf %28, %36 : vector<2x64xf32>
    %cst_15 = arith.constant 2.000000e+00 : f32
    %38 = vector.broadcast %cst_15 : f32 to vector<2x64xf32>
    %39 = arith.subf %38, %37 : vector<2x64xf32>
    %40 = arith.mulf %36, %39 : vector<2x64xf32>
    %41 = arith.subf %28, %33 : vector<2x64xf32>
    %42 = arith.mulf %41, %40 : vector<2x64xf32>
    %43 = arith.subf %34, %42 : vector<2x64xf32>
    %cst_16 = arith.constant 1.000000e+00 : f32
    %44 = vector.broadcast %cst_16 : f32 to vector<2x64xf32>
    %45 = arith.subf %44, %43 : vector<2x64xf32>
    %46 = vector.shape_cast %45 : vector<2x64xf32> to vector<1x2x64xf32>
    %cst_17 = arith.constant dense<0.000000e+00> : vector<1xf32>
    %47 = vector.multi_reduction <add>, %46, %cst_17 [1, 2] : vector<1x2x64xf32> to vector<1xf32>
    %48 = vector.shape_cast %47 : vector<1xf32> to vector<1x1x1xf32>
    %49 = vector.extract %48[0, 0, 0] : f32 from vector<1x1x1xf32>
    %50 = vector.broadcast %49 : f32 to vector<1x1x1xf32>
    %c0_18 = arith.constant 0 : index
    %c0_19 = arith.constant 0 : index
    %c0_20 = arith.constant 0 : index
    %51 = vector.load %arg4[%c0_18, %c0_19, %c0_20] : memref<1x1x1xf32, #tpu.memory_space<vmem>>, vector<1x1x1xf32>
    tpu.vector_store %arg4[%c0_18, %c0_19, %c0_20], %50 {strides = array<i32>} : memref<1x1x1xf32, #tpu.memory_space<vmem>>, vector<1x1x1xf32>,
    return
  }
  func.func @transform_0(%arg0: i32) -> (i32, i32) {
    %c0_i32 = arith.constant 0 : i32
    %c0_i32_0 = arith.constant 0 : i32
    return %arg0, %c0_i32 : i32, i32
  }
  func.func @transform_1(%arg0: i32) -> (i32, i32) {
    %c0_i32 = arith.constant 0 : i32
    %c0_i32_0 = arith.constant 0 : i32
    return %arg0, %c0_i32 : i32, i32
  }
  func.func @transform_2(%arg0: i32) -> (i32, i32) {
    %c0_i32 = arith.constant 0 : i32
    %c0_i32_0 = arith.constant 0 : i32
    return %arg0, %c0_i32 : i32, i32
  }
  func.func @transform_3(%arg0: i32) -> (i32, i32, i32) {
    %c0_i32 = arith.constant 0 : i32
    %c0_i32_0 = arith.constant 0 : i32
    %c0_i32_1 = arith.constant 0 : i32
    return %arg0, %c0_i32, %c0_i32_0 : i32, i32, i32
  }
}

</mosaic_0001>

<llo_original>
// kernel: tpu_custom_call.1
$region0: #{tpu_custom_call.1}
  #allocation0 [shape = 'u32[]', space=smem, size = 0x4, offset = 0x4, fixed_abs, tag = 'smem constant byte address 0x4 - core index']
  #allocation1 [shape = 'u32[144,128]{1,0:T(1,128)}', space=vmem, size = 0x12000, scoped, tag = 'internal scratch']
  %s0 = inlined_call_operand.hbm [shape: f32[2,256], index: 0, kind: input, shape index: {}]
  %s1 = inlined_call_operand.hbm [shape: f32[2,256], index: 1, kind: input, shape index: {}]
  %s2 = inlined_call_operand.hbm [shape: f32[2,64], index: 2, kind: output, shape index: {0}]
  %s3 = inlined_call_operand.hbm [shape: f32[1,1,1], index: 3, kind: output, shape index: {1}]
  %4 = xla_tuple %s2, %s3
  %s5 = sld [smem:[#allocation0]]
  $region34: #{tpu_custom_call.1} parent=0
    _
  %s7 = ssub.s32 1, %s5
  %s8 = scalar_select 0, %s7, %s5
  $region1: #{tpu_custom_call.1} parent=0
    #allocation2 [shape = 'u8[2048]{0}', space=vmem, size = 0x800, scoped, tag = 'input window, operand 0, single buffered']
    #allocation3 [shape = 's32[1]{0}', space=sflag, size = 0x4, scoped, tag = 'scoped memory for tpu_custom_call.1']
    #allocation4 [shape = 's32[1]{0}', space=sflag, size = 0x4, scoped, tag = 'scoped memory for tpu_custom_call.1']
    #allocation5 [shape = 'u8[2048]{0}', space=vmem, size = 0x800, scoped, tag = 'input window, operand 1, single buffered']
    #allocation6 [shape = 's32[1]{0}', space=sflag, size = 0x4, scoped, tag = 'scoped memory for tpu_custom_call.1']
    #allocation7 [shape = 'u8[1024]{0}', space=vmem, size = 0x400, scoped, tag = 'output window, operand 0, single buffered']
    #allocation8 [shape = 'u8[512]{0}', space=vmem, size = 0x400, scoped, tag = 'output window, operand 1, single buffered']
    #allocation9 [shape = 's32[1]{0}', space=sflag, size = 0x4, scoped, tag = 'scoped memory for tpu_custom_call.1']
    %9 = vsyncpa [#allocation3], 0
    %10 = vsyncpa [#allocation6], 0
    %11 = vsyncpa [#allocation4], 0
    %12 = vsyncpa [#allocation9], 0
    // Predicated region
    $region2: #{tpu_custom_call.1} parent=1 // pred_check
      _
    $region3: #{tpu_custom_call.1} parent=1 // pred_check_branch
      %14 = sbr.rel (0) target = $region5
    $region4: #{tpu_custom_call.1} parent=1 // pred_region
      %s16 = ssub.s32 64, 64
      %17 = vsyncadd [#allocation3], %s16
      %s19 = sshll.u32 [#allocation2], 4
      %s20 = int_to_ptr.vmem [resolvable:$true] %s19
      %22 = dma.hbm_to_vmem [thread:$0]  %s0, 64, %s20, [#allocation3]
    $region5: #{tpu_custom_call.1} parent=1 // pred_fallthru
      _
    // Predicated region
    $region6: #{tpu_custom_call.1} parent=1 // pred_check
      _
    $region7: #{tpu_custom_call.1} parent=1 // pred_check_branch
      %24 = sbr.rel (0) target = $region9
    $region8: #{tpu_custom_call.1} parent=1 // pred_region
      %s26 = ssub.s32 64, 64
      %27 = vsyncadd [#allocation6], %s26
      %s29 = sshll.u32 [#allocation5], 4
      %s30 = int_to_ptr.vmem [resolvable:$true] %s29
      %32 = dma.hbm_to_vmem [thread:$0]  %s1, 64, %s30, [#allocation6]
    $region9: #{tpu_custom_call.1} parent=1 // pred_fallthru
      _
    // Predicated region
    $region10: #{tpu_custom_call.1} parent=1 // pred_check
      _
    $region11: #{tpu_custom_call.1} parent=1 // pred_check_branch
      %34 = sbr.rel (0) target = $region13
    $region12: #{tpu_custom_call.1} parent=1 // pred_region
      %35 = dma.done [#allocation3], 64
    $region13: #{tpu_custom_call.1} parent=1 // pred_fallthru
      _
    // Predicated region
    $region14: #{tpu_custom_call.1} parent=1 // pred_check
      _
    $region15: #{tpu_custom_call.1} parent=1 // pred_check_branch
      %37 = sbr.rel (0) target = $region17
    $region16: #{tpu_custom_call.1} parent=1 // pred_region
      %38 = dma.done [#allocation6], 64
    $region17: #{tpu_custom_call.1} parent=1 // pred_fallthru
      _
    %v39 = vld [vmem:[#allocation2] sm:$0x3]
    %v40 = vld [vmem:[#allocation2 + $0x2] sm:$0x3]
    %v41 = vld [vmem:[#allocation5] sm:$0x3]
    %v42 = vld [vmem:[#allocation5 + $0x2] sm:$0x3]
    %v43 = vadd.f32 %v41, %v42
    %45 = vrot.lane.b32.xlu0 %v43, 64
    %v46 = vpop.permute.xlu0 %45
    %v48 = vmul.f32 %v43, %v46
    %v49 = vadd.f32 %v39, %v40
    %51 = vrot.lane.b32.xlu0 %v49, 64
    %v52 = vpop.permute.xlu0 %51
    %v54 = vmul.f32 %v49, %v52
    %v55 = vmin.f32 %v39, %v41
    %v56 = vmin.f32 %v40, %v42
    %v57 = vadd.f32 %v55, %v56
    %v58 = vmax.f32 %v39, %v41
    %v59 = vmax.f32 %v40, %v42
    %v60 = vadd.f32 %v58, %v59
    %62 = vrot.lane.b32.xlu0 %v60, 64
    %v63 = vpop.permute.xlu0 %62
    %v65 = vmul.f32 %v60, %v63
    %v66 = vadd.f32 %v65, 1e-07
    %68 = vrot.lane.b32.xlu0 %v57, 64
    %v69 = vpop.permute.xlu0 %68
    %v71 = vmul.f32 %v57, %v69
    %v72 = vadd.f32 %v48, %v54
    %v73 = vsub.f32 %v72, %v71
    %v74 = vadd.f32 %v73, 1e-07
    %v75 = vrcp.pop %v74
    %v76 = vmul.f32 %v71, %v75
    %vm77 = vcmask 517120
    %78 = vst.msk [vmem:[#allocation7] sm:$0x3] %vm77, %v76
    %v79 = vrcp.pop %v66
    %v80 = vmul.f32 %v66, %v79
    %v81 = vsub.f32 2.0, %v80
    %v82 = vmul.f32 %v79, %v81
    %v83 = vsub.f32 %v66, %v74
    %v84 = vmul.f32 %v83, %v82
    %v85 = vsub.f32 %v76, %v84
    %v86 = vsub.f32 1.0, %v85
    %v87 = vsel %vm77, %v86, 0.0
    %88 = vadd.xlane.f32.xlu0 %v87
    %v89 = vpop.xlane.xlu0 %88
    %v90 = vrot.slane %v89, 4
    %v91 = vadd.f32 %v89, %v90
    %v92 = vrot.slane %v91, 2
    %v93 = vadd.f32 %v91, %v92
    %v94 = vrot.slane %v93, 1
    %v95 = vadd.f32 %v93, %v94
    %s96 = vtos %v95
    %v97 = vstv %s96
    %vm98 = vcmask 0
    %99 = vst.msk [vmem:[#allocation8] sm:$0x1] %vm98, %v97
    // Predicated region
    $region18: #{tpu_custom_call.1} parent=1 // pred_check
      _
    $region19: #{tpu_custom_call.1} parent=1 // pred_check_branch
      %101 = sbr.rel (0) target = $region21
    $region20: #{tpu_custom_call.1} parent=1 // pred_region
      %s103 = ssub.s32 32, 32
      %104 = vsyncadd [#allocation4], %s103
      %s106 = sshll.u32 [#allocation7], 4
      %s107 = int_to_ptr.vmem [resolvable:$true] %s106
      %109 = dma.vmem_to_hbm [thread:$0]  %s107, 32, %s2, [#allocation4]
    $region21: #{tpu_custom_call.1} parent=1 // pred_fallthru
      _
    // Predicated region
    $region22: #{tpu_custom_call.1} parent=1 // pred_check
      _
    $region23: #{tpu_custom_call.1} parent=1 // pred_check_branch
      %111 = sbr.rel (0) target = $region25
    $region24: #{tpu_custom_call.1} parent=1 // pred_region
      %s113 = ssub.s32 16, 16
      %114 = vsyncadd [#allocation9], %s113
      %s116 = sshll.u32 [#allocation8], 4
      %s117 = int_to_ptr.vmem [resolvable:$true] %s116
      %119 = dma.vmem_to_hbm [thread:$0]  %s117, 16, %s3, [#allocation9]
    $region25: #{tpu_custom_call.1} parent=1 // pred_fallthru
      _
    // Predicated region
    $region26: #{tpu_custom_call.1} parent=1 // pred_check
      _
    $region27: #{tpu_custom_call.1} parent=1 // pred_check_branch
      %121 = sbr.rel (0) target = $region29
    $region28: #{tpu_custom_call.1} parent=1 // pred_region
      %122 = dma.done [#allocation4], 32
    $region29: #{tpu_custom_call.1} parent=1 // pred_fallthru
      _
    // Predicated region
    $region30: #{tpu_custom_call.1} parent=1 // pred_check
      _
    $region31: #{tpu_custom_call.1} parent=1 // pred_check_branch
      %124 = sbr.rel (0) target = $region33
    $region32: #{tpu_custom_call.1} parent=1 // pred_region
      %125 = dma.done [#allocation9], 16
    $region33: #{tpu_custom_call.1} parent=1 // pred_fallthru
      _
    %126 = vsyncpa [#allocation3], 1
    %127 = vsyncpa [#allocation6], 1
    %128 = vsyncpa [#allocation4], 1
    %129 = vsyncpa [#allocation9], 1

</llo_original>
